<compile_context>
chip_gen: v7x
topology: tpu7x:2x2x1
jax: 0.10.0
libtpu: 0.0.40
codegen_flags: <defaults>
</compile_context>

<pallas_src>
import functools

import jax
import jax.numpy as jnp
from jax.experimental import pallas as pl
from jax.experimental.pallas import tpu as pltpu


def _attention_kernel(x_ref, w_ref, b_ref, o_ref, *, seq, compute_dtype):
    # x_ref: (TB*S, D)   w_ref: (D, NP)   b_ref: (1, NP)   o_ref: (TB, NP)
    # NP = round_up(3*D, 128); lanes [0,D)=V, [D,2D)=Q, [2D,3D)=K, remainder zero-padded.
    rows, d = x_ref.shape
    np_ = w_ref.shape[1]
    tb = rows // seq

    x2 = x_ref[...].astype(compute_dtype)
    w = w_ref[...].astype(compute_dtype)

    # Fused V/Q/K projection: one lane-dense MXU pass, f32 accumulation + f32 bias.
    qkv = jnp.dot(x2, w, preferred_element_type=jnp.float32) + b_ref[...]   # (TB*S, NP)
    qkv3 = qkv.reshape(tb, seq, np_)                                        # split sublane axis

    q = qkv3[..., d:2 * d]
    k = qkv3[..., 2 * d:3 * d]

    # Per-row attention logits + numerically stable softmax over the sequence axis.
    scores = jnp.sum(q * k, axis=-1) * (d ** -0.5)                          # (TB, S)
    scores = scores - jnp.max(scores, axis=-1, keepdims=True)
    e = jnp.exp(scores)
    denom = jnp.sum(e, axis=-1, keepdims=True)
    inv = pl.reciprocal(denom, approx=True)                                 # EUP slot
    inv = inv * (2.0 - denom * inv)                                         # one Newton step
    a = e * inv                                                             # (TB, S)

    # Softmax-weighted sum over S: linear-cost VPU multiply + sublane reduce (S on the
    # sublane axis).  Computing over the whole padded slab keeps the store lane-dense;
    # the V result lives in lanes [0, D).
    out = jnp.sum(a[:, :, None] * qkv3, axis=1)                             # (TB, NP)
    o_ref[...] = out.astype(o_ref.dtype)


def attention_forward(x, wq, bq, wk, bk, wv, bv, *, block_b=512,
                      compute_dtype=jnp.float32):
    """x: (B, S, D) float32. Weights use PyTorch Linear layout W=(out, in), b=(out,).

    compute_dtype=jnp.bfloat16 is recommended on v6e/v7x for MXU throughput (accumulation
    stays f32); the default keeps f32 operands for exact parity with the PyTorch module.
    """
    B, S, D = x.shape
    n_fused = 3 * D
    n_pad = ((n_fused + 127) // 128) * 128

    # Fuse + pre-transpose the projection weights to (in, out).  V first so the valid
    # output occupies lanes [0, D) and the epilogue is a prefix slice.
    w_qkv = jnp.concatenate([wv.T, wq.T, wk.T], axis=1)             # (D, 3D)
    w_qkv = jnp.pad(w_qkv, ((0, 0), (0, n_pad - n_fused)))          # (D, n_pad)
    b_qkv = jnp.concatenate([bv, bq, bk])[None, :]                  # (1, 3D)
    b_qkv = jnp.pad(b_qkv, ((0, 0), (0, n_pad - n_fused)))          # (1, n_pad)

    # Batch tile: whole batch when small, else a large tile (block_b*S matmul rows) so
    # the ~0.35 us per-grid-step overhead is fully amortized.  Working set at TB=512 is
    # ~3 MiB, far below even v7x's 64 MiB VMEM, so tiling is overhead-driven not memory-
    # driven.  For B > block_b the grid has >=2 steps, so dimension_semantics=("parallel",)
    # shards it across v7x's two TensorCores.
    tb = B if B <= block_b else block_b
    b_pad = pl.cdiv(B, tb) * tb
    if b_pad != B:
        # Zero-pad so padded rows read defined values (avoids OOB VMEM reads); their
        # outputs are discarded below.
        x = jnp.pad(x, ((0, b_pad - B), (0, 0), (0, 0)))

    # 2-D view so each grid step DMAs ONE contiguous (tb*S, D) slab.
    x2d = x.reshape(b_pad * S, D)
    grid = (b_pad // tb,)

    kernel = functools.partial(_attention_kernel, seq=S, compute_dtype=compute_dtype)
    out_padded = pl.pallas_call(
        kernel,
        out_shape=jax.ShapeDtypeStruct((b_pad, n_pad), jnp.float32),
        grid_spec=pltpu.PrefetchScalarGridSpec(
            num_scalar_prefetch=0,
            grid=grid,
            in_specs=[
                pl.BlockSpec((tb * S, D), lambda b: (b, 0)),        # contiguous x tile
                pl.BlockSpec((D, n_pad), lambda b: (0, 0)),         # fused weight stays resident
                pl.BlockSpec((1, n_pad), lambda b: (0, 0)),         # fused bias stays resident
            ],
            out_specs=pl.BlockSpec((tb, n_pad), lambda b: (b, 0)),  # lane-dense 128-wide store
        ),
        compiler_params=pltpu.CompilerParams(
            dimension_semantics=("parallel",),                      # megacore / 2-TC sharding
            vmem_limit_bytes=32 * 1024 * 1024,
        ),
    )(x2d, w_qkv, b_qkv)

    # V-weighted sum lives in lanes [0, D); drop padded batch rows and padded lanes.
    return out_padded[:B, :D]


def attention_reference(x, wq, bq, wk, bk, wv, bv):
    D = x.shape[-1]
    q = jnp.einsum("bsd,ed->bse", x, wq) + bq
    k = jnp.einsum("bsd,ed->bse", x, wk) + bk
    v = jnp.einsum("bsd,ed->bse", x, wv) + bv
    a = jnp.sum(q * k, axis=-1) / (D ** 0.5)
    a = jax.nn.softmax(a, axis=1)
    return jnp.sum(a[:, :, None] * v, axis=1)


if __name__ == "__main__":
    B, S, D = 2, 8, 32  # module default dim=32; small batch/seq smoke test

    key = jax.random.PRNGKey(0)
    kx, kq, kbq, kk, kbk, kv, kbv = jax.random.split(key, 7)

    x = jax.random.normal(kx, (B, S, D), dtype=jnp.float32)
    bound = 1.0 / (D ** 0.5)  # PyTorch Linear default init range
    wq = jax.random.uniform(kq, (D, D), minval=-bound, maxval=bound, dtype=jnp.float32)
    bq = jax.random.uniform(kbq, (D,), minval=-bound, maxval=bound, dtype=jnp.float32)
    wk = jax.random.uniform(kk, (D, D), minval=-bound, maxval=bound, dtype=jnp.float32)
    bk = jax.random.uniform(kbk, (D,), minval=-bound, maxval=bound, dtype=jnp.float32)
    wv = jax.random.uniform(kv, (D, D), minval=-bound, maxval=bound, dtype=jnp.float32)
    bv = jax.random.uniform(kbv, (D,), minval=-bound, maxval=bound, dtype=jnp.float32)

    out = attention_forward(x, wq, bq, wk, bk, wv, bv)
    out = jax.block_until_ready(out)

    ref = attention_reference(x, wq, bq, wk, bk, wv, bv)
    assert out.shape == (B, D), out.shape
    max_err = jnp.max(jnp.abs(out - ref))
    assert jnp.allclose(out, ref, atol=1e-4, rtol=1e-4), max_err

    print("KERNEL_OK")
</pallas_src>

<mosaic_0001>
module attributes {stable_mosaic.version = 11 : i64} {
  func.func @_attention_kernel(%arg0: i32, %arg1: memref<16x32xf32, #tpu.memory_space<vmem>>, %arg2: memref<32x128xf32, #tpu.memory_space<vmem>>, %arg3: memref<1x128xf32, #tpu.memory_space<vmem>>, %arg4: memref<2x128xf32, #tpu.memory_space<vmem>>) attributes {dimension_semantics = [#tpu.dimension_semantics<parallel>], iteration_bounds = array<i64: 1>, scalar_prefetch = 0 : i64, scratch_operands = 0 : i64, tpu.core_type = #tpu.core_type<tc>, window_params = [{transform_indices = @transform_0, window_bounds = array<i64: 16, 32>}, {pipeline_mode = #tpu.pipeline_mode<synchronous>, transform_indices = @transform_1, window_bounds = array<i64: 32, 128>}, {pipeline_mode = #tpu.pipeline_mode<synchronous>, transform_indices = @transform_2, window_bounds = array<i64: 1, 128>}, {transform_indices = @transform_3, window_bounds = array<i64: 2, 128>}]} {
    %c0 = arith.constant 0 : index
    %c0_0 = arith.constant 0 : index
    %0 = vector.load %arg1[%c0, %c0_0] : memref<16x32xf32, #tpu.memory_space<vmem>>, vector<16x32xf32>
    %c0_1 = arith.constant 0 : index
    %c0_2 = arith.constant 0 : index
    %1 = vector.load %arg2[%c0_1, %c0_2] : memref<32x128xf32, #tpu.memory_space<vmem>>, vector<32x128xf32>
    %cst = arith.constant dense<0.000000e+00> : vector<16x128xf32>
    %2 = tpu.matmul %0, %1, %cst {dimension_numbers = #tpu.dot_dimension_numbers<[1], [0], [0], [1], [0, 0, 1, 1], [], []>} : vector<16x32xf32>, vector<32x128xf32>, vector<16x128xf32> -> vector<16x128xf32>
    %c0_3 = arith.constant 0 : index
    %c0_4 = arith.constant 0 : index
    %3 = vector.load %arg3[%c0_3, %c0_4] : memref<1x128xf32, #tpu.memory_space<vmem>>, vector<1x128xf32>
    %4 = vector.broadcast %3 : vector<1x128xf32> to vector<16x128xf32>
    %5 = arith.addf %2, %4 : vector<16x128xf32>
    %6 = vector.shape_cast %5 : vector<16x128xf32> to vector<2x8x128xf32>
    %7 = vector.extract_strided_slice %6 {offsets = [0, 0, 32], sizes = [2, 8, 32], strides = [1, 1, 1]} : vector<2x8x128xf32> to vector<2x8x32xf32>
    %8 = vector.extract_strided_slice %6 {offsets = [0, 0, 64], sizes = [2, 8, 32], strides = [1, 1, 1]} : vector<2x8x128xf32> to vector<2x8x32xf32>
    %9 = arith.mulf %7, %8 : vector<2x8x32xf32>
    %cst_5 = arith.constant dense<0.000000e+00> : vector<2x8xf32>
    %10 = vector.multi_reduction <add>, %9, %cst_5 [2] : vector<2x8x32xf32> to vector<2x8xf32>
    %cst_6 = arith.constant 0.176776692 : f32
    %11 = vector.broadcast %cst_6 : f32 to vector<2x8xf32>
    %12 = arith.mulf %10, %11 : vector<2x8xf32>
    %cst_7 = arith.constant dense<0xFF800000> : vector<2xf32>
    %13 = vector.multi_reduction <maximumf>, %12, %cst_7 [1] : vector<2x8xf32> to vector<2xf32>
    %14 = vector.shape_cast %13 : vector<2xf32> to vector<2x1xf32>
    %15 = vector.broadcast %14 : vector<2x1xf32> to vector<2x8xf32>
    %16 = arith.subf %12, %15 : vector<2x8xf32>
    %17 = math.exp %16 : vector<2x8xf32>
    %cst_8 = arith.constant dense<0.000000e+00> : vector<2xf32>
    %18 = vector.multi_reduction <add>, %17, %cst_8 [1] : vector<2x8xf32> to vector<2xf32>
    %19 = vector.shape_cast %18 : vector<2xf32> to vector<2x1xf32>
    %20 = tpu.reciprocal %19 {approx = true} : vector<2x1xf32> -> vector<2x1xf32>
    %21 = arith.mulf %19, %20 : vector<2x1xf32>
    %cst_9 = arith.constant 2.000000e+00 : f32
    %22 = vector.broadcast %cst_9 : f32 to vector<2x1xf32>
    %23 = arith.subf %22, %21 : vector<2x1xf32>
    %24 = arith.mulf %20, %23 : vector<2x1xf32>
    %25 = vector.broadcast %24 : vector<2x1xf32> to vector<2x8xf32>
    %26 = arith.mulf %17, %25 : vector<2x8xf32>
    %27 = vector.shape_cast %26 : vector<2x8xf32> to vector<2x8x1xf32>
    %28 = vector.broadcast %27 : vector<2x8x1xf32> to vector<2x8x128xf32>
    %29 = arith.mulf %28, %6 : vector<2x8x128xf32>
    %cst_10 = arith.constant dense<0.000000e+00> : vector<2x128xf32>
    %30 = vector.multi_reduction <add>, %29, %cst_10 [1] : vector<2x8x128xf32> to vector<2x128xf32>
    %c0_11 = arith.constant 0 : index
    %c0_12 = arith.constant 0 : index
    %31 = vector.load %arg4[%c0_11, %c0_12] : memref<2x128xf32, #tpu.memory_space<vmem>>, vector<2x128xf32>
    tpu.vector_store %arg4[%c0_11, %c0_12], %30 {strides = array<i32>} : memref<2x128xf32, #tpu.memory_space<vmem>>, vector<2x128xf32>,
    return
  }
  func.func @transform_0(%arg0: i32) -> (i32, i32) {
    %c0_i32 = arith.constant 0 : i32
    %c0_i32_0 = arith.constant 0 : i32
    return %arg0, %c0_i32 : i32, i32
  }
  func.func @transform_1(%arg0: i32) -> (i32, i32) {
    %c0_i32 = arith.constant 0 : i32
    %c0_i32_0 = arith.constant 0 : i32
    %c0_i32_1 = arith.constant 0 : i32
    return %c0_i32, %c0_i32_0 : i32, i32
  }
  func.func @transform_2(%arg0: i32) -> (i32, i32) {
    %c0_i32 = arith.constant 0 : i32
    %c0_i32_0 = arith.constant 0 : i32
    %c0_i32_1 = arith.constant 0 : i32
    return %c0_i32, %c0_i32_0 : i32, i32
  }
  func.func @transform_3(%arg0: i32) -> (i32, i32) {
    %c0_i32 = arith.constant 0 : i32
    %c0_i32_0 = arith.constant 0 : i32
    return %arg0, %c0_i32 : i32, i32
  }
}

</mosaic_0001>

<llo_original>
// kernel: tpu_custom_call.1
$region0: #{tpu_custom_call.1}
  #allocation0 [shape = 'u32[]', space=smem, size = 0x4, offset = 0x4, fixed_abs, tag = 'smem constant byte address 0x4 - core index']
  #allocation1 [shape = 'u32[144,128]{1,0:T(1,128)}', space=vmem, size = 0x12000, scoped, tag = 'internal scratch']
  %s0 = inlined_call_operand.hbm [shape: f32[16,32], index: 0, kind: input, shape index: {}]
  %s1 = inlined_call_operand.hbm [shape: f32[32,128], index: 1, kind: input, shape index: {}]
  %s2 = inlined_call_operand.vmem [shape: f32[1,128], index: 2, kind: input, shape index: {}]
  %s3 = inlined_call_operand.hbm [shape: f32[2,128], index: 3, kind: output, shape index: {}]
  %s4 = sld [smem:[#allocation0]]
  $region30: #{tpu_custom_call.1} parent=0
    _
  %s6 = ssub.s32 1, %s4
  %s7 = scalar_select 0, %s6, %s4
  $region1: #{tpu_custom_call.1} parent=0
    #allocation2 [shape = 'u8[8192]{0}', space=vmem, size = 0x2000, scoped, tag = 'input window, operand 0, single buffered']
    #allocation3 [shape = 's32[1]{0}', space=sflag, size = 0x4, scoped, tag = 'scoped memory for tpu_custom_call.1']
    #allocation4 [shape = 's32[1]{0}', space=sflag, size = 0x4, scoped, tag = 'scoped memory for tpu_custom_call.1']
    #allocation5 [shape = 'u8[16384]{0}', space=vmem, size = 0x4000, scoped, tag = 'input window, operand 1, single buffered']
    #allocation6 [shape = 's32[1]{0}', space=sflag, size = 0x4, scoped, tag = 'scoped memory for tpu_custom_call.1']
    #allocation7 [shape = 'u8[1024]{0}', space=vmem, size = 0x400, scoped, tag = 'output window, operand 0, single buffered']
    %8 = vsyncpa [#allocation3], 0
    %9 = vsyncpa [#allocation6], 0
    %10 = vsyncpa [#allocation4], 0
    // Predicated region
    $region2: #{tpu_custom_call.1} parent=1 // pred_check
      _
    $region3: #{tpu_custom_call.1} parent=1 // pred_check_branch
      %12 = sbr.rel (0) target = $region5
    $region4: #{tpu_custom_call.1} parent=1 // pred_region
      %s14 = ssub.s32 256, 256
      %15 = vsyncadd [#allocation3], %s14
      %s16 = sshll.u32 [#allocation2], 4
      %s17 = int_to_ptr.vmem [resolvable:$true] %s16
      %22 = dma.hbm_to_vmem [thread:$0]  %s0, 256, %s17, [#allocation3], 128, 128, 8
    $region5: #{tpu_custom_call.1} parent=1 // pred_fallthru
      _
    // Predicated region
    $region6: #{tpu_custom_call.1} parent=1 // pred_check
      _
    $region7: #{tpu_custom_call.1} parent=1 // pred_check_branch
      %24 = sbr.rel (0) target = $region9
    $region8: #{tpu_custom_call.1} parent=1 // pred_region
      %s26 = ssub.s32 512, 512
      %27 = vsyncadd [#allocation6], %s26
      %s28 = sshll.u32 [#allocation5], 4
      %s29 = int_to_ptr.vmem [resolvable:$true] %s28
      %34 = dma.hbm_to_vmem [thread:$0]  %s1, 512, %s29, [#allocation6], 128, 128, 8
    $region9: #{tpu_custom_call.1} parent=1 // pred_fallthru
      _
    // Predicated region
    $region10: #{tpu_custom_call.1} parent=1 // pred_check
      _
    $region11: #{tpu_custom_call.1} parent=1 // pred_check_branch
      %36 = sbr.rel (0) target = $region13
    $region12: #{tpu_custom_call.1} parent=1 // pred_region
      _
    $region13: #{tpu_custom_call.1} parent=1 // pred_fallthru
      _
    // Predicated region
    $region14: #{tpu_custom_call.1} parent=1 // pred_check
      _
    $region15: #{tpu_custom_call.1} parent=1 // pred_check_branch
      %38 = sbr.rel (0) target = $region17
    $region16: #{tpu_custom_call.1} parent=1 // pred_region
      %39 = dma.done [#allocation3], 256
    $region17: #{tpu_custom_call.1} parent=1 // pred_fallthru
      _
    // Predicated region
    $region18: #{tpu_custom_call.1} parent=1 // pred_check
      _
    $region19: #{tpu_custom_call.1} parent=1 // pred_check_branch
      %41 = sbr.rel (0) target = $region21
    $region20: #{tpu_custom_call.1} parent=1 // pred_region
      %42 = dma.done [#allocation6], 512
    $region21: #{tpu_custom_call.1} parent=1 // pred_fallthru
      _
    %v43 = vld [vmem:[#allocation2] sm:$0xff]
    %v44 = vld [vmem:[#allocation2 + $0x8] sm:$0xff]
    %v45 = vld [vmem:[#allocation5] sm:$0xff]
    %v46 = vld [vmem:[#allocation5 + $0x8] sm:$0xff]
    %v47 = vld [vmem:[#allocation5 + $0x10] sm:$0xff]
    %v48 = vld [vmem:[#allocation5 + $0x18] sm:$0xff]
    %v49 = vld [vmem:[%s2] sm:$0x1]
    %v51 = vlaneseq
    %v52 = vshrl.u32 %v51, 7
    %v53 = vsub.s32 0, %v52
    %v54 = vrot.slane %v49, %v53
    %vm56 = vcmask 261120
    %v58 = vsel %vm56, %v43, 0
    %v61 = vsel %vm56, %v44, 0
    %63 = vmatprep.subr.mxu0 0.0
    %64 = vmatpush1.msra.mxu0 %v45
    %65 = vmatprep.subr.mxu0 0.0
    %66 = vmatpush1.msra.mxu0 %v46
    %67 = vmatprep.subr.mxu0 0.0
    %68 = vmatpush1.msra.mxu0 %v47
    %69 = vmatprep.subr.mxu0 0.0
    %70 = vmatpush1.msra.mxu0 %v48
    %71 = vmatprep.subr.mxu0 0.0
    %72 = vmatpush1.msra.mxu0 0.0
    %73 = vmatprep.subr.mxu0 0.0
    %74 = vmatpush1.msra.mxu0 0.0
    %75 = vmatprep.subr.mxu0 0.0
    %76 = vmatpush1.msra.mxu0 0.0
    %77 = vmatprep.subr.mxu0 0.0
    %78 = vmatpush1.msra.mxu0 0.0
    %79 = vmatprep.subr.mxu0 0.0
    %80 = vmatpush1.msra.mxu0 0.0
    %81 = vmatprep.subr.mxu0 0.0
    %82 = vmatpush1.msra.mxu0 0.0
    %83 = vmatprep.subr.mxu0 0.0
    %84 = vmatpush1.msra.mxu0 0.0
    %85 = vmatprep.subr.mxu0 0.0
    %86 = vmatpush1.msra.mxu0 0.0
    %87 = vmatprep.subr.mxu0 0.0
    %88 = vmatpush1.msra.mxu0 0.0
    %89 = vmatprep.subr.mxu0 0.0
    %90 = vmatpush1.msra.mxu0 0.0
    %91 = vmatprep.subr.mxu0 0.0
    %92 = vmatpush1.msra.mxu0 0.0
    %93 = vmatprep.subr.mxu0 0.0
    %94 = vmatpush1.msra.mxu0 0.0
    %95 = vmatprep.subr.mxu0 0.0
    %96 = vmatpush1.msra.mxu0 0.0
    %97 = vmatprep.subr.mxu0 0.0
    %98 = vmatpush1.msra.mxu0 0.0
    %99 = vmatprep.subr.mxu0 0.0
    %100 = vmatpush1.msra.mxu0 0.0
    %101 = vmatprep.subr.mxu0 0.0
    %102 = vmatpush1.msra.mxu0 0.0
    %103 = vmatprep.subr.mxu0 0.0
    %104 = vmatpush1.msra.mxu0 0.0
    %105 = vmatprep.subr.mxu0 0.0
    %106 = vmatpush1.msra.mxu0 0.0
    %107 = vmatprep.subr.mxu0 0.0
    %108 = vmatpush1.msra.mxu0 0.0
    %109 = vmatprep.subr.mxu0 0.0
    %110 = vmatpush1.msra.mxu0 0.0
    %111 = vmatprep.subr.mxu0 0.0
    %112 = vmatpush1.msra.mxu0 0.0
    %113 = vmatprep.subr.mxu0 0.0
    %114 = vmatpush1.msra.mxu0 0.0
    %115 = vmatprep.subr.mxu0 0.0
    %116 = vmatpush1.msra.mxu0 0.0
    %117 = vmatprep.subr.mxu0 0.0
    %118 = vmatpush1.msra.mxu0 0.0
    %119 = vmatprep.subr.mxu0 0.0
    %120 = vmatpush1.msra.mxu0 0.0
    %121 = vmatprep.subr.mxu0 0.0
    %122 = vmatpush1.msra.mxu0 0.0
    %123 = vmatprep.subr.mxu0 0.0
    %124 = vmatpush1.msra.mxu0 0.0
    %125 = vmatprep.subr.mxu0 0.0
    %126 = vmatpush1.msra.mxu0 0.0
    %127 = vmatprep.mubr.f32.mxu0 0.0
    %128 = vmatmul.mubr.f32.gmra.mrb[0].mxu0 %v58
    %v129 = vpop.f32.mrb[0].mxu0
    %v130 = vadd.f32 %v54, %v129
    %v131 = vpop.f32.mrb[0].mxu0
    %132 = vmatprep.mubr.f32.mxu0 0.0
    %133 = vmatmul.mubr.f32.gmra.mrb[0].mxu0 %v61
    %v134 = vpop.f32.mrb[0].mxu0
    %v135 = vadd.f32 %v54, %v134
    %v136 = vpop.f32.mrb[0].mxu0
    %137 = vdwg.mxu0
    %140 = vrot.lane.b32.xlu0 %v130, 96
    %v141 = vpop.permute.xlu0 %140
    %142 = vrot.lane.b32.xlu0 %v135, 96
    %v143 = vpop.permute.xlu0 %142
    %v146 = vmul.f32 %v130, %v141
    %v147 = vmul.f32 %v135, %v143
    %150 = vrot.lane.b32.xlu0 %v146, 96
    %v151 = vpop.permute.xlu0 %150
    %152 = vrot.lane.b32.xlu0 %v147, 96
    %v153 = vpop.permute.xlu0 %152
    %v156 = vsel %vm56, %v151, 0.0
    %157 = vadd.xlane.f32.xlu0 %v156
    %v158 = vpop.xlane.xlu0 %157
    %v159 = vsel %vm56, %v153, 0.0
    %160 = vadd.xlane.f32.xlu0 %v159
    %v161 = vpop.xlane.xlu0 %160
    %v162 = vmul.f32 %v158, 0.17677669
    %v163 = vmul.f32 %v161, 0.17677669
    %v166 = vlaneseq
    %v167 = vand.u32 %v166, 127
    %v168 = vlaneseq
    %v169 = vshrl.u32 %v168, 7
    %v170 = vsub.s32 %v167, %v169
    %v171 = vrot.slane %v162, %v170
    %v172 = vlaneseq
    %v173 = vshrl.u32 %v172, 7
    %v174 = vsub.s32 %v167, %v173
    %v175 = vrot.slane %v163, %v174
    %vm176 = vcmask 1041409
    %v177 = vsel %vm176, %v175, %v171
    %vm179 = vcmask 58368
    %v180 = vsel %vm179, %v177, -inf
    %181 = vmax.xlane.f32.xlu0 %v180
    %v182 = vpop.xlane.xlu0 %181
    %v184 = vlaneseq
    %v185 = vshrl.u32 %v184, 7
    %v186 = vsub.s32 0, %v185
    %v187 = vrot.slane %v182, %v186
    %v188 = vlaneseq
    %v189 = vshrl.u32 %v188, 7
    %v190 = vsub.s32 1, %v189
    %v191 = vrot.slane %v182, %v190
    %v194 = vsub.f32 %v162, %v187
    %v195 = vsub.f32 %v163, %v191
    %v196 = vmul.f32 %v194, 1.442695
    %v197 = vpow.pop %v196
    %v198 = vmul.f32 %v195, 1.442695
    %v199 = vpow.pop %v198
    %202 = vset.pattern.permute.xlu0 0
    %203 = vperm.xlu0 %202, %v197
    %v204 = vpop.permute.xlu0 %203
    %205 = vset.pattern.permute.xlu0 0
    %206 = vperm.xlu0 %205, %v199
    %v207 = vpop.permute.xlu0 %206
    %v208 = vlaneseq
    %v209 = vshrl.u32 %v208, 7
    %v210 = vsub.s32 %v167, %v209
    %v211 = vrot.slane %v204, %v210
    %v212 = vlaneseq
    %v213 = vshrl.u32 %v212, 7
    %v214 = vsub.s32 %v167, %v213
    %v215 = vrot.slane %v207, %v214
    %v216 = vsel %vm176, %v215, %v211
    %v218 = vsel %vm179, %v216, 0.0
    %219 = vadd.xlane.f32.xlu0 %v218
    %v220 = vpop.xlane.xlu0 %219
    %v221 = vrcp.pop %v220
    %v222 = vmul.f32 %v220, %v221
    %v223 = vsub.f32 2.0, %v222
    %v224 = vmul.f32 %v221, %v223
    %v226 = vlaneseq
    %v227 = vshrl.u32 %v226, 7
    %v228 = vsub.s32 0, %v227
    %v229 = vrot.slane %v224, %v228
    %v230 = vlaneseq
    %v231 = vshrl.u32 %v230, 7
    %v232 = vsub.s32 1, %v231
    %v233 = vrot.slane %v224, %v232
    %v236 = vmul.f32 %v197, %v229
    %v237 = vmul.f32 %v199, %v233
    %239 = vset.pattern.permute.xlu0 0
    %240 = vperm.xlu0 %239, %v236
    %v241 = vpop.permute.xlu0 %240
    %244 = vset.pattern.permute.xlu0 0
    %245 = vperm.xlu0 %244, %v237
    %v246 = vpop.permute.xlu0 %245
    %v248 = vmul.f32 %v241, %v130
    %v249 = vmul.f32 %v246, %v135
    %v250 = vrot.slane %v248, 4
    %v251 = vadd.f32 %v248, %v250
    %v252 = vrot.slane %v251, 2
    %v253 = vadd.f32 %v251, %v252
    %v254 = vrot.slane %v253, 1
    %v255 = vadd.f32 %v253, %v254
    %v256 = vrot.slane %v249, 4
    %v257 = vadd.f32 %v249, %v256
    %v258 = vrot.slane %v257, 2
    %v259 = vadd.f32 %v257, %v258
    %v260 = vrot.slane %v259, 1
    %v261 = vadd.f32 %v259, %v260
    %v264 = vsel %vm176, %v261, %v255
    %266 = vst [vmem:[#allocation7] sm:$0x3] %v264
    // Predicated region
    $region22: #{tpu_custom_call.1} parent=1 // pred_check
      _
    $region23: #{tpu_custom_call.1} parent=1 // pred_check_branch
      %268 = sbr.rel (0) target = $region25
    $region24: #{tpu_custom_call.1} parent=1 // pred_region
      %s270 = ssub.s32 32, 32
      %271 = vsyncadd [#allocation4], %s270
      %s273 = sshll.u32 [#allocation7], 4
      %s274 = int_to_ptr.vmem [resolvable:$true] %s273
      %276 = dma.vmem_to_hbm [thread:$0]  %s274, 32, %s3, [#allocation4]
    $region25: #{tpu_custom_call.1} parent=1 // pred_fallthru
      _
    // Predicated region
    $region26: #{tpu_custom_call.1} parent=1 // pred_check
      _
    $region27: #{tpu_custom_call.1} parent=1 // pred_check_branch
      %278 = sbr.rel (0) target = $region29
    $region28: #{tpu_custom_call.1} parent=1 // pred_region
      %279 = dma.done [#allocation4], 32
    $region29: #{tpu_custom_call.1} parent=1 // pred_fallthru
      _
    %280 = vsyncpa [#allocation3], 1
    %281 = vsyncpa [#allocation6], 1
    %282 = vsyncpa [#allocation4], 1

</llo_original>
